<compile_context>
chip_gen: v7x
topology: tpu7x:2x2x1
jax: 0.10.0
libtpu: 0.0.40
codegen_flags: <defaults>
</compile_context>

<pallas_src>
import functools

import numpy as np
import jax
import jax.numpy as jnp
from jax import lax
from jax.experimental import pallas as pl
from jax.experimental.pallas import tpu as pltpu

_EPS = 1e-6
_MAX_TILE = 8192   # pixel-axis DMA tile (lane axis); multiple of _CHUNK
_CHUNK = 512       # in-kernel compute sub-chunk (lane axis); multiple of 128


def _round_up(x, m):
    return ((x + m - 1) // m) * m


# -----------------------------------------------------------------------------
# TPS constant construction (numpy glue, mirrors the TPS helper class).
# -----------------------------------------------------------------------------
def _build_C(num_fiducial, fiducial_type="edge"):
    """Fiducial control points in normalized [-1, 1] coords."""
    half = num_fiducial // 2
    x = np.linspace(-1.0, 1.0, half)
    if fiducial_type == "edge":
        top = np.stack([x, -np.ones(half)], axis=1)
        bot = np.stack([x, np.ones(half)], axis=1)
        return np.concatenate([top, bot], axis=0)
    # TODO(synk): exact 'cross' fiducial layout of the original TPSNet TPS class
    # is not given in the reference; using center horizontal + vertical lines.
    y = np.linspace(-1.0, 1.0, half)
    horiz = np.stack([x, np.zeros(half)], axis=1)
    vert = np.stack([np.zeros(half), y], axis=1)
    return np.concatenate([horiz, vert], axis=0)


def _build_P_border(num_points):
    """Border sample points: num_points on top edge + num_points on bottom edge."""
    x = np.linspace(-1.0, 1.0, num_points)
    top = np.stack([x, -np.ones(num_points)], axis=1)
    bot = np.stack([x, np.ones(num_points)], axis=1)
    return np.concatenate([top, bot], axis=0)  # (2*num_points, 2)


def _build_P_hat(C, P):
    """P_hat = [1, x, y, U(||p - C_f||)] per border point -> (n, F+3)."""
    n = P.shape[0]
    diff = P[:, None, :] - C[None, :, :]
    r2 = np.sum(diff * diff, axis=2)
    rbf = r2 * np.log(r2 + _EPS)
    return np.concatenate([np.ones((n, 1)), P, rbf], axis=1)


def _build_decode_matrices(num_fiducial, num_fiducial_gt, num_sample,
                           fiducial_type, gt_channels):
    """A_gt (4S, gt_channels), A_pr (4S, 2*(F+3)) such that per pixel

         A_pr @ reg_map - A_gt @ gt_map = [x_pre - x_gt ; y_pre - y_gt]  (4S,)

    The first 3 gt channels (tr_idx / tcl / train_mask) map to zero columns so
    the raw 37-channel gt map can be fed to the kernel without slicing.
    Coefficients are assumed interleaved x/y (view(-1, F+3, 2) in the ref).
    """
    C_gt = _build_C(num_fiducial_gt, "edge")
    C_pr = _build_C(num_fiducial, fiducial_type)
    Pb = _build_P_border(num_sample)
    phat_gt = _build_P_hat(C_gt, Pb)   # (2S, Fgt+3)
    phat_pr = _build_P_hat(C_pr, Pb)   # (2S, F+3)

    two_s = 2 * num_sample
    k_gt = num_fiducial_gt + 3
    k_pr = num_fiducial + 3

    A_gt = np.zeros((2 * two_s, gt_channels), np.float32)
    A_gt[:two_s, 3:3 + 2 * k_gt:2] = phat_gt       # x coeff channels 3,5,...
    A_gt[two_s:, 4:4 + 2 * k_gt:2] = phat_gt       # y coeff channels 4,6,...

    A_pr = np.zeros((2 * two_s, 2 * k_pr), np.float32)
    A_pr[:two_s, 0:2 * k_pr:2] = phat_pr
    A_pr[two_s:, 1:2 * k_pr:2] = phat_pr
    return A_gt, A_pr


# -----------------------------------------------------------------------------
# Pallas kernel: fused TPS-border decode + smooth-L1 + weighted reduction.
# -----------------------------------------------------------------------------
def _point_loss_kernel(gt_ref, reg_ref, w_ref, a_gt_ref, a_pr_ref, out_ref,
                       *, chunk, n_chunks, inv_points):
    t = pl.program_id(1)

    @pl.when(t == 0)
    def _init():
        out_ref[...] = jnp.zeros_like(out_ref)

    acc = jnp.zeros((1, chunk), jnp.float32)
    for c in range(n_chunks):                       # static unroll (n_chunks small)
        off = c * chunk                             # static, 128-aligned
        gt_c = gt_ref[0, :, pl.ds(off, chunk)].astype(jnp.float32)    # (37, chunk)
        reg_c = reg_ref[0, :, pl.ds(off, chunk)].astype(jnp.float32)  # (22, chunk)
        w_c = w_ref[0, :, pl.ds(off, chunk)]                          # (1, chunk) f32
        # Two small MXU matmuls decode pred/gt borders; columns for the first 3
        # gt channels are zero in A_gt, so no channel slicing is needed.
        diff = (jnp.dot(a_pr_ref[...], reg_c, preferred_element_type=jnp.float32)
                - jnp.dot(a_gt_ref[...], gt_c, preferred_element_type=jnp.float32))
        ad = jnp.abs(diff)
        sl1 = jnp.where(ad < 1.0, 0.5 * diff * diff, ad - 0.5)
        # sum over all 4S terms / (2S)  ==  mean-over-points(x) + mean-over-points(y)
        per_pixel = jnp.sum(sl1, axis=0, keepdims=True) * inv_points   # (1, chunk)
        # where() (not a plain multiply) so garbage lanes from the ragged last
        # DMA block (zero weight) cannot leak NaN/Inf into the accumulator.
        acc = acc + jnp.where(w_c > 0.0, per_pixel * w_c, 0.0)

    # Fold chunk lanes -> 128 output lanes with static vreg-aligned slices.
    folded = acc[:, 0:128]
    for s in range(1, chunk // 128):
        folded = folded + acc[:, s * 128:(s + 1) * 128]
    out_ref[...] += folded.reshape(1, 1, 128)


def _point_loss_pallas(gt_f, reg_f, w_pad, a_gt, a_pr, *, tile, chunk, inv_points):
    """gt_f: (B, 37, P) raw gt map.  reg_f: (B, 22, P).  w_pad: (B, 1, n_tiles*tile)."""
    B, c_gt, P = gt_f.shape
    c_pr = reg_f.shape[1]
    n_tiles = (P + tile - 1) // tile
    kernel = functools.partial(_point_loss_kernel, chunk=chunk,
                               n_chunks=tile // chunk, inv_points=inv_points)
    out = pl.pallas_call(
        kernel,
        out_shape=jax.ShapeDtypeStruct((B, 1, 128), jnp.float32),
        grid_spec=pltpu.PrefetchScalarGridSpec(
            num_scalar_prefetch=0,
            grid=(B, n_tiles),
            in_specs=[
                pl.BlockSpec((1, c_gt, tile), lambda b, t: (b, 0, t)),
                pl.BlockSpec((1, c_pr, tile), lambda b, t: (b, 0, t)),
                pl.BlockSpec((1, 1, tile), lambda b, t: (b, 0, t)),
                pl.BlockSpec(a_gt.shape, lambda b, t: (0, 0)),   # grid-invariant
                pl.BlockSpec(a_pr.shape, lambda b, t: (0, 0)),   # grid-invariant
            ],
            out_specs=pl.BlockSpec((1, 1, 128), lambda b, t: (b, 0, 0)),
        ),
        compiler_params=pltpu.CompilerParams(
            # batch axis parallel (v7x megacore), tile axis accumulates -> arbitrary
            dimension_semantics=("parallel", "arbitrary"),
            vmem_limit_bytes=32 * 1024 * 1024,
        ),
    )(gt_f, reg_f, w_pad, a_gt, a_pr)
    return jnp.sum(out)   # all lanes hold partial sums; no strided gather


# -----------------------------------------------------------------------------
# TPSLoss forward (small glue in plain JAX, hot path in the Pallas kernel).
# -----------------------------------------------------------------------------
class TPSLossPallas:
    def __init__(self, num_fiducial=8, num_sample=20, num_fiducial_gt=14,
                 point_loss=False, with_weight=True, with_area_weight=True,
                 fiducial_type="cross", steps=(8, 16, 32)):
        self.num_fiducial = num_fiducial
        self.num_fiducial_gt = num_fiducial_gt
        self.num_sample = num_sample
        self.with_point_loss = point_loss
        self.with_center_weight = with_weight
        self.with_area_weight = with_area_weight
        self.steps = list(steps)

        self.gt_channels = 2 * (num_fiducial_gt + 3) + 3     # 37
        self.num_border_points = 2 * num_sample               # 40 (mean divisor)
        a_gt, a_pr = _build_decode_matrices(num_fiducial, num_fiducial_gt,
                                            num_sample, fiducial_type,
                                            self.gt_channels)
        self.a_gt = jnp.asarray(a_gt)   # (4S, 37) f32
        self.a_pr = jnp.asarray(a_pr)   # (4S, 22) f32

    # -- per FPN scale: tiny weight map in the wrapper, bulk work in the kernel --
    def _point_loss_single(self, reg_pred, gt, ds, areas, num_instance):
        B, c_gt, H, W = gt.shape
        P = H * W
        c_pr = reg_pred.shape[1]
        # Free reshapes (collapse minor H,W dims only; no NCHW->NHWC transpose).
        gt_f = gt.reshape(B, c_gt, P)
        reg_f = reg_pred.reshape(B, c_pr, P)

        # ---- per-pixel weight (reads only 3 gt channels + small area gather) ----
        tr_idx = gt_f[:, 0].astype(jnp.float32)
        tcl = gt_f[:, 1].astype(jnp.float32)
        train_mask = gt_f[:, 2].astype(jnp.float32)
        tr_mask = (tr_idx != 0).astype(jnp.float32)
        tr_train_mask = ((train_mask * tr_mask) > 0).astype(jnp.float32)
        num_pos = jnp.sum(tr_train_mask)

        if self.with_center_weight:
            # Reference uses the boolean tr mask when with_area_weight, else the
            # raw tr-index channel.
            base = tr_mask if self.with_area_weight else tr_idx
            weight = 0.5 * (base + tcl)
        else:
            weight = jnp.ones_like(tcl)

        if self.with_area_weight:
            idx = jnp.clip(tr_idx.astype(jnp.int32) - 1, 0, areas.shape[1] - 1)
            pos_area = jnp.take_along_axis(areas, idx, axis=1) / float(ds * ds)
            pos_area = jnp.where(pos_area <= 1.0, 1e8, pos_area)
            weight = weight * (1.0 / pos_area) * (1.0 / jnp.maximum(num_instance, 1.0))
        else:
            weight = weight * jnp.where(num_pos > 0,
                                        1.0 / jnp.maximum(num_pos, 1.0), 0.0)
        # zero out non-positive pixels (kernel also uses weight==0 as the
        # ragged-tile validity mask)
        weight = (weight * tr_train_mask).astype(jnp.float32)

        # ---- tiling: big DMA tiles, 512-lane compute sub-chunks ----
        p128 = _round_up(P, 128)
        if p128 <= _CHUNK:
            tile, chunk = p128, p128
        else:
            tile = min(_MAX_TILE, _round_up(P, _CHUNK))
            chunk = _CHUNK
        n_tiles = (P + tile - 1) // tile
        p_pad = n_tiles * tile
        # Only the 1-channel weight is padded (cheap); coefficient maps are fed
        # raw and their ragged last block is masked via the zero weights.
        w_pad = jnp.pad(weight, ((0, 0), (0, p_pad - P)))[:, None, :]

        return _point_loss_pallas(gt_f, reg_f, w_pad, self.a_gt, self.a_pr,
                                  tile=tile, chunk=chunk,
                                  inv_points=1.0 / float(self.num_border_points))

    def __call__(self, preds, _, p3_maps, p4_maps, p5_maps, polygons_area=None):
        assert isinstance(preds, list)
        assert p3_maps.shape[1] == 2 * (self.num_fiducial_gt + 3) + 3

        if self.with_area_weight:
            assert polygons_area is not None
            max_poly = max(max(len(p) for p in polygons_area), 1)
            pad_areas = np.zeros((len(polygons_area), max_poly), np.float32)
            for bi, po in enumerate(polygons_area):
                if len(po):
                    pad_areas[bi, :len(po)] = np.asarray(po, np.float32)
            pad_areas = jnp.asarray(pad_areas)
            num_instance = jnp.sum((pad_areas > 0).astype(jnp.float32))
        else:
            pad_areas, num_instance = None, None

        if not self.with_point_loss:
            # loss_tr / loss_tcl are computed-and-discarded in the reference;
            # only loss_point is returned.
            return dict(loss_point=jnp.float32(0.0))

        gts = [p3_maps, p4_maps, p5_maps]
        loss = jnp.float32(0.0)
        for (cls_pred, reg_pred), gt, ds in zip(preds, gts, self.steps):
            del cls_pred  # only feeds loss_tr/loss_tcl, which are not returned
            loss = loss + self._point_loss_single(reg_pred, gt, ds,
                                                  pad_areas, num_instance)
        if self.with_area_weight:
            loss = jnp.where(num_instance > 0, loss, 0.0)
        return dict(loss_point=loss)


# -----------------------------------------------------------------------------
# Demo / smoke test
# -----------------------------------------------------------------------------
if __name__ == "__main__":
    key = jax.random.PRNGKey(0)
    B = 2
    num_fiducial, num_fiducial_gt, num_sample = 8, 14, 20
    gt_ch = 2 * (num_fiducial_gt + 3) + 3         # 37
    reg_ch = (num_fiducial + 3) * 2               # 22
    spatials = [(16, 16), (8, 8), (4, 4)]         # p3 / p4 / p5

    polygons_area = [np.array([50.0, 120.0, 300.0]), np.array([80.0, 40.0])]
    npoly = jnp.array([len(p) for p in polygons_area], jnp.int32)

    preds, gt_maps = [], []
    keys = jax.random.split(key, 6 * len(spatials))
    ki = 0
    for (H, W) in spatials:
        cls_pred = jax.random.normal(keys[ki], (B, 4, H, W), jnp.float32); ki += 1
        reg_pred = 0.5 * jax.random.normal(keys[ki], (B, reg_ch, H, W), jnp.float32); ki += 1
        preds.append((cls_pred, reg_pred))

        tr_idx = jax.random.randint(keys[ki], (B, H, W), 0, 4); ki += 1
        tr_idx = jnp.minimum(tr_idx, npoly[:, None, None]).astype(jnp.float32)
        tcl = (jax.random.uniform(keys[ki], (B, H, W)) > 0.5).astype(jnp.float32); ki += 1
        trm = (jax.random.uniform(keys[ki], (B, H, W)) > 0.2).astype(jnp.float32); ki += 1
        tps = 0.5 * jax.random.normal(
            keys[ki], (B, (num_fiducial_gt + 3) * 2, H, W), jnp.float32); ki += 1
        gt = jnp.concatenate(
            [tr_idx[:, None], tcl[:, None], trm[:, None], tps], axis=1)
        assert gt.shape[1] == gt_ch
        gt_maps.append(gt)

    loss_mod = TPSLossPallas(num_fiducial=num_fiducial, num_sample=num_sample,
                             num_fiducial_gt=num_fiducial_gt, point_loss=True,
                             with_weight=True, with_area_weight=True,
                             fiducial_type="cross", steps=[8, 16, 32])

    out = loss_mod(preds, None, gt_maps[0], gt_maps[1], gt_maps[2],
                   polygons_area=polygons_area)
    jax.block_until_ready(out["loss_point"])
    print("KERNEL_OK")
</pallas_src>

<mosaic_0001>
module attributes {stable_mosaic.version = 11 : i64} {
  func.func @_point_loss_kernel(%arg0: i32, %arg1: i32, %arg2: memref<1x37x256xf32, #tpu.memory_space<vmem>>, %arg3: memref<1x22x256xf32, #tpu.memory_space<vmem>>, %arg4: memref<1x1x256xf32, #tpu.memory_space<vmem>>, %arg5: memref<80x37xf32, #tpu.memory_space<vmem>>, %arg6: memref<80x22xf32, #tpu.memory_space<vmem>>, %arg7: memref<1x1x128xf32, #tpu.memory_space<vmem>>) attributes {dimension_semantics = [#tpu.dimension_semantics<parallel>, #tpu.dimension_semantics<arbitrary>], iteration_bounds = array<i64: 2, 1>, scalar_prefetch = 0 : i64, scratch_operands = 0 : i64, tpu.core_type = #tpu.core_type<tc>, window_params = [{transform_indices = @transform_0, window_bounds = array<i64: 1, 37, 256>}, {transform_indices = @transform_1, window_bounds = array<i64: 1, 22, 256>}, {transform_indices = @transform_2, window_bounds = array<i64: 1, 1, 256>}, {pipeline_mode = #tpu.pipeline_mode<synchronous>, transform_indices = @transform_3, window_bounds = array<i64: 80, 37>}, {pipeline_mode = #tpu.pipeline_mode<synchronous>, transform_indices = @transform_4, window_bounds = array<i64: 80, 22>}, {transform_indices = @transform_5, window_bounds = array<i64: 1, 1, 128>}]} {
    %c0_i32 = arith.constant 0 : i32
    %0 = arith.cmpi eq, %arg1, %c0_i32 : i32
    %1 = arith.extui %0 : i1 to i32
    %c0_i32_0 = arith.constant 0 : i32
    %2 = arith.cmpi ne, %1, %c0_i32_0 : i32
    scf.if %2 {
      %cst_28 = arith.constant 0.000000e+00 : f32
      %41 = vector.broadcast %cst_28 : f32 to vector<1x1x128xf32>
      %c0_29 = arith.constant 0 : index
      %c0_30 = arith.constant 0 : index
      %c0_31 = arith.constant 0 : index
      %42 = vector.load %arg7[%c0_29, %c0_30, %c0_31] : memref<1x1x128xf32, #tpu.memory_space<vmem>>, vector<1x1x128xf32>
      tpu.vector_store %arg7[%c0_29, %c0_30, %c0_31], %41 {strides = array<i32>} : memref<1x1x128xf32, #tpu.memory_space<vmem>>, vector<1x1x128xf32>,
    } else {
    }
    %cst = arith.constant 0.000000e+00 : f32
    %3 = vector.broadcast %cst : f32 to vector<1x256xf32>
    %c0 = arith.constant 0 : index
    %c0_1 = arith.constant 0 : index
    %c0_2 = arith.constant 0 : index
    %4 = vector.load %arg2[%c0, %c0_1, %c0_2] : memref<1x37x256xf32, #tpu.memory_space<vmem>>, vector<1x37x256xf32>
    %5 = vector.shape_cast %4 : vector<1x37x256xf32> to vector<37x256xf32>
    %c0_3 = arith.constant 0 : index
    %c0_4 = arith.constant 0 : index
    %c0_5 = arith.constant 0 : index
    %6 = vector.load %arg3[%c0_3, %c0_4, %c0_5] : memref<1x22x256xf32, #tpu.memory_space<vmem>>, vector<1x22x256xf32>
    %7 = vector.shape_cast %6 : vector<1x22x256xf32> to vector<22x256xf32>
    %c0_6 = arith.constant 0 : index
    %c0_7 = arith.constant 0 : index
    %c0_8 = arith.constant 0 : index
    %8 = vector.load %arg4[%c0_6, %c0_7, %c0_8] : memref<1x1x256xf32, #tpu.memory_space<vmem>>, vector<1x1x256xf32>
    %9 = vector.shape_cast %8 : vector<1x1x256xf32> to vector<1x256xf32>
    %c0_9 = arith.constant 0 : index
    %c0_10 = arith.constant 0 : index
    %10 = vector.load %arg6[%c0_9, %c0_10] : memref<80x22xf32, #tpu.memory_space<vmem>>, vector<80x22xf32>
    %cst_11 = arith.constant dense<0.000000e+00> : vector<80x256xf32>
    %11 = tpu.matmul %10, %7, %cst_11 {dimension_numbers = #tpu.dot_dimension_numbers<[1], [0], [0], [1], [0, 0, 1, 1], [], []>} : vector<80x22xf32>, vector<22x256xf32>, vector<80x256xf32> -> vector<80x256xf32>
    %c0_12 = arith.constant 0 : index
    %c0_13 = arith.constant 0 : index
    %12 = vector.load %arg5[%c0_12, %c0_13] : memref<80x37xf32, #tpu.memory_space<vmem>>, vector<80x37xf32>
    %cst_14 = arith.constant dense<0.000000e+00> : vector<80x256xf32>
    %13 = tpu.matmul %12, %5, %cst_14 {dimension_numbers = #tpu.dot_dimension_numbers<[1], [0], [0], [1], [0, 0, 1, 1], [], []>} : vector<80x37xf32>, vector<37x256xf32>, vector<80x256xf32> -> vector<80x256xf32>
    %14 = arith.subf %11, %13 : vector<80x256xf32>
    %15 = math.absf %14 : vector<80x256xf32>
    %cst_15 = arith.constant 1.000000e+00 : f32
    %16 = vector.broadcast %cst_15 : f32 to vector<80x256xf32>
    %17 = arith.cmpf olt, %15, %16 : vector<80x256xf32>
    %cst_16 = arith.constant 5.000000e-01 : f32
    %18 = vector.broadcast %cst_16 : f32 to vector<80x256xf32>
    %19 = arith.mulf %18, %14 : vector<80x256xf32>
    %20 = arith.mulf %19, %14 : vector<80x256xf32>
    %cst_17 = arith.constant 5.000000e-01 : f32
    %21 = vector.broadcast %cst_17 : f32 to vector<80x256xf32>
    %22 = arith.subf %15, %21 : vector<80x256xf32>
    %23 = arith.select %17, %20, %22 : vector<80x256xi1>, vector<80x256xf32>
    %cst_18 = arith.constant dense<0.000000e+00> : vector<256xf32>
    %24 = vector.multi_reduction <add>, %23, %cst_18 [0] : vector<80x256xf32> to vector<256xf32>
    %25 = vector.shape_cast %24 : vector<256xf32> to vector<1x256xf32>
    %cst_19 = arith.constant 2.500000e-02 : f32
    %26 = vector.broadcast %cst_19 : f32 to vector<1x256xf32>
    %27 = arith.mulf %25, %26 : vector<1x256xf32>
    %cst_20 = arith.constant 0.000000e+00 : f32
    %28 = vector.broadcast %cst_20 : f32 to vector<1x256xf32>
    %29 = arith.cmpf ogt, %9, %28 : vector<1x256xf32>
    %30 = arith.mulf %27, %9 : vector<1x256xf32>
    %cst_21 = arith.constant 0.000000e+00 : f32
    %31 = vector.broadcast %cst_21 : f32 to vector<1x256xf32>
    %32 = arith.select %29, %30, %31 : vector<1x256xi1>, vector<1x256xf32>
    %33 = arith.addf %3, %32 : vector<1x256xf32>
    %34 = vector.extract_strided_slice %33 {offsets = [0, 0], sizes = [1, 128], strides = [1, 1]} : vector<1x256xf32> to vector<1x128xf32>
    %35 = vector.extract_strided_slice %33 {offsets = [0, 128], sizes = [1, 128], strides = [1, 1]} : vector<1x256xf32> to vector<1x128xf32>
    %36 = arith.addf %34, %35 : vector<1x128xf32>
    %c0_22 = arith.constant 0 : index
    %c0_23 = arith.constant 0 : index
    %c0_24 = arith.constant 0 : index
    %37 = vector.load %arg7[%c0_22, %c0_23, %c0_24] : memref<1x1x128xf32, #tpu.memory_space<vmem>>, vector<1x1x128xf32>
    %38 = vector.shape_cast %36 : vector<1x128xf32> to vector<1x1x128xf32>
    %39 = arith.addf %37, %38 : vector<1x1x128xf32>
    %c0_25 = arith.constant 0 : index
    %c0_26 = arith.constant 0 : index
    %c0_27 = arith.constant 0 : index
    %40 = vector.load %arg7[%c0_25, %c0_26, %c0_27] : memref<1x1x128xf32, #tpu.memory_space<vmem>>, vector<1x1x128xf32>
    tpu.vector_store %arg7[%c0_25, %c0_26, %c0_27], %39 {strides = array<i32>} : memref<1x1x128xf32, #tpu.memory_space<vmem>>, vector<1x1x128xf32>,
    return
  }
  func.func @transform_0(%arg0: i32, %arg1: i32) -> (i32, i32, i32) {
    %c0_i32 = arith.constant 0 : i32
    %c0_i32_0 = arith.constant 0 : i32
    return %arg0, %c0_i32, %arg1 : i32, i32, i32
  }
  func.func @transform_1(%arg0: i32, %arg1: i32) -> (i32, i32, i32) {
    %c0_i32 = arith.constant 0 : i32
    %c0_i32_0 = arith.constant 0 : i32
    return %arg0, %c0_i32, %arg1 : i32, i32, i32
  }
  func.func @transform_2(%arg0: i32, %arg1: i32) -> (i32, i32, i32) {
    %c0_i32 = arith.constant 0 : i32
    %c0_i32_0 = arith.constant 0 : i32
    return %arg0, %c0_i32, %arg1 : i32, i32, i32
  }
  func.func @transform_3(%arg0: i32, %arg1: i32) -> (i32, i32) {
    %c0_i32 = arith.constant 0 : i32
    %c0_i32_0 = arith.constant 0 : i32
    %c0_i32_1 = arith.constant 0 : i32
    return %c0_i32, %c0_i32_0 : i32, i32
  }
  func.func @transform_4(%arg0: i32, %arg1: i32) -> (i32, i32) {
    %c0_i32 = arith.constant 0 : i32
    %c0_i32_0 = arith.constant 0 : i32
    %c0_i32_1 = arith.constant 0 : i32
    return %c0_i32, %c0_i32_0 : i32, i32
  }
  func.func @transform_5(%arg0: i32, %arg1: i32) -> (i32, i32, i32) {
    %c0_i32 = arith.constant 0 : i32
    %c0_i32_0 = arith.constant 0 : i32
    %c0_i32_1 = arith.constant 0 : i32
    return %arg0, %c0_i32, %c0_i32_0 : i32, i32, i32
  }
}

</mosaic_0001>

<llo_original>
// kernel: tpu_custom_call.1
$region0: #{tpu_custom_call.1}
  #allocation0 [shape = 'u32[]', space=smem, size = 0x4, offset = 0x4, fixed_abs, tag = 'smem constant byte address 0x4 - core index']
  #allocation1 [shape = 'u32[144,128]{1,0:T(1,128)}', space=vmem, size = 0x12000, scoped, tag = 'internal scratch']
  %s0 = inlined_call_operand.vmem [shape: f32[2,37,256], index: 0, kind: input, shape index: {}]
  %s1 = inlined_call_operand.vmem [shape: f32[2,22,256], index: 1, kind: input, shape index: {}]
  %s2 = inlined_call_operand.vmem [shape: f32[2,1,256], index: 2, kind: input, shape index: {}]
  %s3 = inlined_call_operand.vmem [shape: f32[80,37], index: 3, kind: input, shape index: {}]
  %s4 = inlined_call_operand.vmem [shape: f32[80,22], index: 4, kind: input, shape index: {}]
  %s5 = inlined_call_operand.hbm [shape: f32[2,1,128], index: 5, kind: output, shape index: {}]
  %s6 = sld [smem:[#allocation0]]
  $region57: #{tpu_custom_call.1} parent=0
    _
  %s8 = ssub.s32 1, %s6
  %s9 = scalar_select 0, %s8, %s6
  $region1: #{tpu_custom_call.1} parent=0
    #allocation2 [shape = 'u8[1024]{0}', space=vmem, size = 0x400, scoped, tag = 'output window, operand 0']
    #allocation3 [shape = 's32[2]{0}', space=sflag, size = 0x8, scoped, tag = 'scoped memory for tpu_custom_call.1']
    %10 = vsyncpa [#allocation3], 0
    %s11 = scalar_lea.sflag [#allocation3], 1
    %12 = vsyncpa %s11, 0
    loop: start=0, step=1, limit=4
    $region2: #{tpu_custom_call.1} parent=1 // loop_pre_header
      _
    $region3: #{tpu_custom_call.1} parent=1 // loop_header
      %s14 = sphi 0, %s18
      %p15 = scmp.ge.s32.totalorder %s14, 4
      %s21 = sphi 0, %s33
      %s22 = sphi 0, %s29
      %s23 = sphi 0, %s21
      %s24 = sphi 0, %s22
      %s25 = sphi 0, %s23
      %s26 = sphi 0, %s24
      %s38 = sphi 0, %s40
      %s41 = sphi 0, %s38
      %s42 = sphi 0, %s41
      %s58 = sphi 0, %s42
      %s66 = sphi 0, %s68
      %s69 = sphi 0, %s66
      %s70 = sphi 0, %s69
      %s86 = sphi 0, %s70
      %s94 = sphi 0, %s96
      %s97 = sphi 0, %s94
      %s98 = sphi 0, %s97
      %s114 = sphi 0, %s98
      %s118 = sphi 0, %s118
      %s120 = sphi 0, %s118
      %s121 = sphi 0, %s120
      %s135 = sphi 0, %s121
      %s139 = sphi 0, %s139
      %s141 = sphi 0, %s139
      %s142 = sphi 0, %s141
      %s156 = sphi 0, %s142
      %s162 = sphi 0, %s164
      %s165 = sphi 0, %s162
      %s166 = sphi 0, %s165
      %s182 = sphi 0, %s166
    $region4: #{tpu_custom_call.1} parent=1 // loop_header_branch
      %17 = sbr.rel (%p15) target = $region8
    $region5: #{tpu_custom_call.1} parent=1 // loop_body
      %s19 = ssub.s32 %s14, 1
      %s20 = ssub.s32 %s14, 2
      %s27 = sadd.s32 1, %s22
      %p28 = scmp.ge.s32.totalorder %s27, 1
      %s29 = scalar_select %p28, 0, %s27
      %s30 = sadd.s32 1, %s21
      %s31 = scalar_select %p28, %s30, %s21
      %p32 = scmp.ge.s32.totalorder %s31, 2
      %s33 = scalar_select %p32, 0, %s31
      %s34 = ssub.s32 %s21, %s33
      %s35 = ssub.s32 %s22, %s29
      %s36 = sor.u32 %s34, %s35
      %p37 = scmp.eq.s32.totalorder %s36, 0
      %s39 = sadd.s32 %s38, 1
      %s40 = scalar_select %p37, %s38, %s39
      %p43 = pneg %p37
      %p44 = scmp.eq.s32.totalorder %s14, 1
      %p45 = por %p43, %p44
      %p46 = scmp.ne.s32.totalorder %s38, %s41
      %p47 = scmp.eq.s32.totalorder %s14, 0
      %p48 = por %p46, %p47
      %p49 = scmp.ne.s32.totalorder %s38, %s41
      %p50 = scmp.eq.s32.totalorder %s19, 1
      %p51 = por %p49, %p50
      %p52 = scmp.ne.s32.totalorder %s41, %s42
      %p53 = scmp.eq.s32.totalorder %s19, 0
      %p54 = por %p52, %p53
      %p55 = scmp.ne.s32.totalorder %s41, %s42
      %p56 = scmp.eq.s32.totalorder %s20, 1
      %p57 = por %p55, %p56
      %p59 = scmp.ne.s32.totalorder %s42, %s58
      %p60 = scmp.eq.s32.totalorder %s20, 0
      %p61 = por %p59, %p60
      %s62 = ssub.s32 %s21, %s33
      %s63 = ssub.s32 %s22, %s29
      %s64 = sor.u32 %s62, %s63
      %p65 = scmp.eq.s32.totalorder %s64, 0
      %s67 = sadd.s32 %s66, 1
      %s68 = scalar_select %p65, %s66, %s67
      %p71 = pneg %p65
      %p72 = scmp.eq.s32.totalorder %s14, 1
      %p73 = por %p71, %p72
      %p74 = scmp.ne.s32.totalorder %s66, %s69
      %p75 = scmp.eq.s32.totalorder %s14, 0
      %p76 = por %p74, %p75
      %p77 = scmp.ne.s32.totalorder %s66, %s69
      %p78 = scmp.eq.s32.totalorder %s19, 1
      %p79 = por %p77, %p78
      %p80 = scmp.ne.s32.totalorder %s69, %s70
      %p81 = scmp.eq.s32.totalorder %s19, 0
      %p82 = por %p80, %p81
      %p83 = scmp.ne.s32.totalorder %s69, %s70
      %p84 = scmp.eq.s32.totalorder %s20, 1
      %p85 = por %p83, %p84
      %p87 = scmp.ne.s32.totalorder %s70, %s86
      %p88 = scmp.eq.s32.totalorder %s20, 0
      %p89 = por %p87, %p88
      %s90 = ssub.s32 %s21, %s33
      %s91 = ssub.s32 %s22, %s29
      %s92 = sor.u32 %s90, %s91
      %p93 = scmp.eq.s32.totalorder %s92, 0
      %s95 = sadd.s32 %s94, 1
      %s96 = scalar_select %p93, %s94, %s95
      %p99 = pneg %p93
      %p100 = scmp.eq.s32.totalorder %s14, 1
      %p101 = por %p99, %p100
      %p102 = scmp.ne.s32.totalorder %s94, %s97
      %p103 = scmp.eq.s32.totalorder %s14, 0
      %p104 = por %p102, %p103
      %p105 = scmp.ne.s32.totalorder %s94, %s97
      %p106 = scmp.eq.s32.totalorder %s19, 1
      %p107 = por %p105, %p106
      %p108 = scmp.ne.s32.totalorder %s97, %s98
      %p109 = scmp.eq.s32.totalorder %s19, 0
      %p110 = por %p108, %p109
      %p111 = scmp.ne.s32.totalorder %s97, %s98
      %p112 = scmp.eq.s32.totalorder %s20, 1
      %p113 = por %p111, %p112
      %p115 = scmp.ne.s32.totalorder %s98, %s114
      %p116 = scmp.eq.s32.totalorder %s20, 0
      %p117 = por %p115, %p116
      %s119 = sadd.s32 %s118, 1
      %p122 = scmp.eq.s32.totalorder %s14, 1
      %p123 = scmp.ne.s32.totalorder %s118, %s120
      %p124 = scmp.eq.s32.totalorder %s14, 0
      %p125 = por %p123, %p124
      %p126 = scmp.ne.s32.totalorder %s118, %s120
      %p127 = scmp.eq.s32.totalorder %s19, 1
      %p128 = por %p126, %p127
      %p129 = scmp.ne.s32.totalorder %s120, %s121
      %p130 = scmp.eq.s32.totalorder %s19, 0
      %p131 = por %p129, %p130
      %p132 = scmp.ne.s32.totalorder %s120, %s121
      %p133 = scmp.eq.s32.totalorder %s20, 1
      %p134 = por %p132, %p133
      %p136 = scmp.ne.s32.totalorder %s121, %s135
      %p137 = scmp.eq.s32.totalorder %s20, 0
      %p138 = por %p136, %p137
      %s140 = sadd.s32 %s139, 1
      %p143 = scmp.eq.s32.totalorder %s14, 1
      %p144 = scmp.ne.s32.totalorder %s139, %s141
      %p145 = scmp.eq.s32.totalorder %s14, 0
      %p146 = por %p144, %p145
      %p147 = scmp.ne.s32.totalorder %s139, %s141
      %p148 = scmp.eq.s32.totalorder %s19, 1
      %p149 = por %p147, %p148
      %p150 = scmp.ne.s32.totalorder %s141, %s142
      %p151 = scmp.eq.s32.totalorder %s19, 0
      %p152 = por %p150, %p151
      %p153 = scmp.ne.s32.totalorder %s141, %s142
      %p154 = scmp.eq.s32.totalorder %s20, 1
      %p155 = por %p153, %p154
      %p157 = scmp.ne.s32.totalorder %s142, %s156
      %p158 = scmp.eq.s32.totalorder %s20, 0
      %p159 = por %p157, %p158
      %s160 = ssub.s32 %s21, %s33
      %p161 = scmp.eq.s32.totalorder %s160, 0
      %s163 = sadd.s32 %s162, 1
      %s164 = scalar_select %p161, %s162, %s163
      %p167 = pneg %p161
      %p168 = scmp.eq.s32.totalorder %s14, 1
      %p169 = por %p167, %p168
      %p170 = scmp.ne.s32.totalorder %s162, %s165
      %p171 = scmp.eq.s32.totalorder %s14, 0
      %p172 = por %p170, %p171
      %p173 = scmp.ne.s32.totalorder %s162, %s165
      %p174 = scmp.eq.s32.totalorder %s19, 1
      %p175 = por %p173, %p174
      %p176 = scmp.ne.s32.totalorder %s165, %s166
      %p177 = scmp.eq.s32.totalorder %s19, 0
      %p178 = por %p176, %p177
      %p179 = scmp.ne.s32.totalorder %s165, %s166
      %p180 = scmp.eq.s32.totalorder %s20, 1
      %p181 = por %p179, %p180
      %p183 = scmp.ne.s32.totalorder %s166, %s182
      %p184 = scmp.eq.s32.totalorder %s20, 0
      %p185 = por %p183, %p184
      %p186 = scmp.le.s32.totalorder 1, %s14
      %p187 = scmp.lt.s32.totalorder %s14, 3
      %p188 = pnand %p186, %p187
      %p189 = pneg %p188
      // Predicated region
      $region9: #{tpu_custom_call.1} parent=5 // pred_check
        _
      $region10: #{tpu_custom_call.1} parent=5 // pred_check_branch
        %191 = sbr.rel (%p188) target = $region12
      $region11: #{tpu_custom_call.1} parent=5 // pred_region
        %s192 = ssub.s32 %s14, 1
        // Predicated region
        $region13: #{tpu_custom_call.1} parent=11 // pred_check
          %p193 = pneg %p131
        $region14: #{tpu_custom_call.1} parent=11 // pred_check_branch
          %195 = sbr.rel (%p193) target = $region16
        $region15: #{tpu_custom_call.1} parent=11 // pred_region
          _
        $region16: #{tpu_custom_call.1} parent=11 // pred_fallthru
          _
        // Predicated region
        $region17: #{tpu_custom_call.1} parent=11 // pred_check
          %p196 = pneg %p152
        $region18: #{tpu_custom_call.1} parent=11 // pred_check_branch
          %198 = sbr.rel (%p196) target = $region20
        $region19: #{tpu_custom_call.1} parent=11 // pred_region
          _
        $region20: #{tpu_custom_call.1} parent=11 // pred_fallthru
          _
      $region12: #{tpu_custom_call.1} parent=5 // pred_fallthru
        _
      %p199 = scmp.lt.s32.totalorder %s14, 2
      // Predicated region
      $region21: #{tpu_custom_call.1} parent=5 // pred_check
        %p200 = pneg %p199
      $region22: #{tpu_custom_call.1} parent=5 // pred_check_branch
        %202 = sbr.rel (%p200) target = $region24
      $region23: #{tpu_custom_call.1} parent=5 // pred_region
        // Predicated region
        $region25: #{tpu_custom_call.1} parent=23 // pred_check
          %p203 = pneg %p48
        $region26: #{tpu_custom_call.1} parent=23 // pred_check_branch
          %205 = sbr.rel (%p203) target = $region28
        $region27: #{tpu_custom_call.1} parent=23 // pred_region
          %s206 = smul.u32 2, %s22
          %p207 = scmp.lt.s32.totalorder %s21, 1
          %s208 = scalar_select %p207, %s21, 1
          %p209 = scmp.lt.s32.totalorder %s206, 1
          %s210 = scalar_select %p209, %s206, 1
          %s211 = smul.addr %s208, 10
          %s212 = sadd.s32 %s210, %s211
          %s213 = smul.addr %s212, 8
          %s214 = scalar_lea.vmem %s0, %s213
          %s215 = smul.u32 2, %s22
        $region28: #{tpu_custom_call.1} parent=23 // pred_fallthru
          _
        // Predicated region
        $region29: #{tpu_custom_call.1} parent=23 // pred_check
          %p216 = pneg %p76
        $region30: #{tpu_custom_call.1} parent=23 // pred_check_branch
          %218 = sbr.rel (%p216) target = $region32
        $region31: #{tpu_custom_call.1} parent=23 // pred_region
          %s219 = smul.u32 2, %s22
          %p220 = scmp.lt.s32.totalorder %s21, 1
          %s221 = scalar_select %p220, %s21, 1
          %p222 = scmp.lt.s32.totalorder %s219, 1
          %s223 = scalar_select %p222, %s219, 1
          %s224 = smul.addr %s221, 6
          %s225 = sadd.s32 %s223, %s224
          %s226 = smul.addr %s225, 8
          %s227 = scalar_lea.vmem %s1, %s226
          %s228 = smul.u32 2, %s22
        $region32: #{tpu_custom_call.1} parent=23 // pred_fallthru
          _
        // Predicated region
        $region33: #{tpu_custom_call.1} parent=23 // pred_check
          %p229 = pneg %p104
        $region34: #{tpu_custom_call.1} parent=23 // pred_check_branch
          %231 = sbr.rel (%p229) target = $region36
        $region35: #{tpu_custom_call.1} parent=23 // pred_region
          %s232 = smul.u32 2, %s22
          %p233 = scmp.lt.s32.totalorder %s21, 1
          %s234 = scalar_select %p233, %s21, 1
          %p235 = scmp.lt.s32.totalorder %s232, 1
          %s236 = scalar_select %p235, %s232, 1
          %s237 = smul.addr %s234, 2
          %s238 = sadd.s32 %s236, %s237
          %s239 = scalar_lea.vmem %s2, %s238
          %s240 = smul.u32 2, %s22
        $region36: #{tpu_custom_call.1} parent=23 // pred_fallthru
          _
      $region24: #{tpu_custom_call.1} parent=5 // pred_fallthru
        _
      %p241 = scmp.le.s32.totalorder 1, %s14
      %p242 = scmp.lt.s32.totalorder %s14, 3
      %p243 = pnand %p241, %p242
      %p244 = pneg %p243
      // Predicated region
      $region37: #{tpu_custom_call.1} parent=5 // pred_check
        _
      $region38: #{tpu_custom_call.1} parent=5 // pred_check_branch
        %246 = sbr.rel (%p243) target = $region40
      $region39: #{tpu_custom_call.1} parent=5 // pred_region
        %s247 = ssub.s32 %s14, 1
        %s248 = smul.u32 2, %s24
        %p249 = scmp.lt.s32.totalorder %s23, 1
        %s250 = scalar_select %p249, %s23, 1
        %p251 = scmp.lt.s32.totalorder %s248, 1
        %s252 = scalar_select %p251, %s248, 1
        %s253 = smul.addr %s250, 10
        %s254 = sadd.s32 %s252, %s253
        %s255 = smul.addr %s254, 8
        %s256 = scalar_lea.vmem %s0, %s255
        %p257 = pneg %p54
        %p258 = pneg %p51
        %s259 = smul.u32 2, %s24
        %p260 = scmp.lt.s32.totalorder %s23, 1
        %s261 = scalar_select %p260, %s23, 1
        %p262 = scmp.lt.s32.totalorder %s259, 1
        %s263 = scalar_select %p262, %s259, 1
        %s264 = smul.addr %s261, 6
        %s265 = sadd.s32 %s263, %s264
        %s266 = smul.addr %s265, 8
        %s267 = scalar_lea.vmem %s1, %s266
        %p268 = pneg %p82
        %p269 = pneg %p79
        %s270 = smul.u32 2, %s24
        %p271 = scmp.lt.s32.totalorder %s23, 1
        %s272 = scalar_select %p271, %s23, 1
        %p273 = scmp.lt.s32.totalorder %s270, 1
        %s274 = scalar_select %p273, %s270, 1
        %s275 = smul.addr %s272, 2
        %s276 = sadd.s32 %s274, %s275
        %s277 = scalar_lea.vmem %s2, %s276
        %p278 = pneg %p110
        %p279 = pneg %p107
        %p280 = pneg %p131
        %p281 = pneg %p128
        %p282 = pneg %p152
        %p283 = pneg %p149
        %p284 = pneg %p178
        %p285 = pneg %p175
        %s286 = sand.u32 %s165, 1
        %s287 = scalar_lea.sflag [#allocation3], %s286
        %s288 = sand.u32 %s165, 1
        %s289 = scalar_lea.vmem [#allocation2], %s288
        %s290 = smul.u32 2, %s24
        %p291 = scmp.lt.s32.totalorder %s23, 1
        %s292 = scalar_select %p291, %s23, 1
        %p293 = scmp.lt.s32.totalorder %s290, 1
        %s294 = scalar_select %p293, %s290, 1
        %s295 = smul.addr %s292, 10
        %s296 = sadd.s32 %s294, %s295
        %s297 = smul.addr %s296, 8
        %s298 = scalar_lea.vmem %s0, %s297
        %s299 = smul.u32 2, %s24
        %s300 = smul.u32 2, %s24
        %p301 = scmp.lt.s32.totalorder %s23, 1
        %s302 = scalar_select %p301, %s23, 1
        %p303 = scmp.lt.s32.totalorder %s300, 1
        %s304 = scalar_select %p303, %s300, 1
        %s305 = smul.addr %s302, 6
        %s306 = sadd.s32 %s304, %s305
        %s307 = smul.addr %s306, 8
        %s308 = scalar_lea.vmem %s1, %s307
        %s309 = smul.u32 2, %s24
        %s310 = smul.u32 2, %s24
        %p311 = scmp.lt.s32.totalorder %s23, 1
        %s312 = scalar_select %p311, %s23, 1
        %p313 = scmp.lt.s32.totalorder %s310, 1
        %s314 = scalar_select %p313, %s310, 1
        %s315 = smul.addr %s312, 2
        %s316 = sadd.s32 %s314, %s315
        %s317 = scalar_lea.vmem %s2, %s316
        %s318 = smul.u32 2, %s24
        %p319 = scmp.eq.s32.totalorder %s24, 0
        // Predicated region
        $region41: #{tpu_custom_call.1} parent=39 // pred_check
          %p320 = pneg %p319
        $region42: #{tpu_custom_call.1} parent=39 // pred_check_branch
          %322 = sbr.rel (%p320) target = $region44
        $region43: #{tpu_custom_call.1} parent=39 // pred_region
          %323 = vst [vmem:[%s289] sm:$0x1] 0.0
        $region44: #{tpu_custom_call.1} parent=39 // pred_fallthru
          _
        %v324 = vld [vmem:[%s298] sm:$0xff]
        %v325 = vld [vmem:[%s298 + $0x8] sm:$0xff]
        %v326 = vld [vmem:[%s298 + $0x10] sm:$0xff]
        %v327 = vld [vmem:[%s298 + $0x18] sm:$0xff]
        %v328 = vld [vmem:[%s298 + $0x20] sm:$0xff]
        %v329 = vld [vmem:[%s298 + $0x28] sm:$0xff]
        %v330 = vld [vmem:[%s298 + $0x30] sm:$0xff]
        %v331 = vld [vmem:[%s298 + $0x38] sm:$0xff]
        %v332 = vld [vmem:[%s298 + $0x40] sm:$0x1f]
        %v333 = vld [vmem:[%s298 + $0x48] sm:$0x1f]
        %v334 = vld [vmem:[%s308] sm:$0xff]
        %v335 = vld [vmem:[%s308 + $0x8] sm:$0xff]
        %v336 = vld [vmem:[%s308 + $0x10] sm:$0xff]
        %v337 = vld [vmem:[%s308 + $0x18] sm:$0xff]
        %v338 = vld [vmem:[%s308 + $0x20] sm:$0x3f]
        %v339 = vld [vmem:[%s308 + $0x28] sm:$0x3f]
        %v340 = vld [vmem:[%s317] sm:$0x3]
        %v341 = vld [vmem:[%s4] sm:$0xff]
        %v342 = vld [vmem:[%s4 + $0x8] sm:$0xff]
        %v343 = vld [vmem:[%s4 + $0x10] sm:$0xff]
        %v344 = vld [vmem:[%s4 + $0x18] sm:$0xff]
        %v345 = vld [vmem:[%s4 + $0x20] sm:$0xff]
        %v346 = vld [vmem:[%s4 + $0x28] sm:$0xff]
        %v347 = vld [vmem:[%s4 + $0x30] sm:$0xff]
        %v348 = vld [vmem:[%s4 + $0x38] sm:$0xff]
        %v349 = vld [vmem:[%s4 + $0x40] sm:$0xff]
        %v350 = vld [vmem:[%s4 + $0x48] sm:$0xff]
        %vm351 = vcmask 179200
        %v353 = vsel %vm351, %v341, 0
        %v356 = vsel %vm351, %v342, 0
        %v359 = vsel %vm351, %v343, 0
        %v362 = vsel %vm351, %v344, 0
        %v365 = vsel %vm351, %v345, 0
        %v368 = vsel %vm351, %v346, 0
        %v371 = vsel %vm351, %v347, 0
        %v374 = vsel %vm351, %v348, 0
        %v377 = vsel %vm351, %v349, 0
        %v380 = vsel %vm351, %v350, 0
        %vm382 = vcmask 1045504
        %v384 = vsel %vm382, %v338, 0
        %v387 = vsel %vm382, %v339, 0
        %389 = vmatprep.subr.mxu0 %v335
        %390 = vmatpush1.msra.mxu0 %v334
        %391 = vmatprep.subr.mxu0 %v337
        %392 = vmatpush1.msra.mxu0 %v336
        %393 = vmatprep.subr.mxu0 %v387
        %394 = vmatpush1.msra.mxu0 %v384
        %395 = vmatprep.subr.mxu0 0.0
        %396 = vmatpush1.msra.mxu0 0.0
        %397 = vmatprep.subr.mxu0 0.0
        %398 = vmatpush1.msra.mxu0 0.0
        %399 = vmatprep.subr.mxu0 0.0
        %400 = vmatpush1.msra.mxu0 0.0
        %401 = vmatprep.subr.mxu0 0.0
        %402 = vmatpush1.msra.mxu0 0.0
        %403 = vmatprep.subr.mxu0 0.0
        %404 = vmatpush1.msra.mxu0 0.0
        %405 = vmatprep.subr.mxu0 0.0
        %406 = vmatpush1.msra.mxu0 0.0
        %407 = vmatprep.subr.mxu0 0.0
        %408 = vmatpush1.msra.mxu0 0.0
        %409 = vmatprep.subr.mxu0 0.0
        %410 = vmatpush1.msra.mxu0 0.0
        %411 = vmatprep.subr.mxu0 0.0
        %412 = vmatpush1.msra.mxu0 0.0
        %413 = vmatprep.subr.mxu0 0.0
        %414 = vmatpush1.msra.mxu0 0.0
        %415 = vmatprep.subr.mxu0 0.0
        %416 = vmatpush1.msra.mxu0 0.0
        %417 = vmatprep.subr.mxu0 0.0
        %418 = vmatpush1.msra.mxu0 0.0
        %419 = vmatprep.subr.mxu0 0.0
        %420 = vmatpush1.msra.mxu0 0.0
        %421 = vmatprep.subr.mxu0 0.0
        %422 = vmatpush1.msra.mxu0 0.0
        %423 = vmatprep.subr.mxu0 0.0
        %424 = vmatpush1.msra.mxu0 0.0
        %425 = vmatprep.subr.mxu0 0.0
        %426 = vmatpush1.msra.mxu0 0.0
        %427 = vmatprep.subr.mxu0 0.0
        %428 = vmatpush1.msra.mxu0 0.0
        %429 = vmatprep.subr.mxu0 0.0
        %430 = vmatpush1.msra.mxu0 0.0
        %431 = vmatprep.subr.mxu0 0.0
        %432 = vmatpush1.msra.mxu0 0.0
        %433 = vmatprep.subr.mxu0 0.0
        %434 = vmatpush1.msra.mxu0 0.0
        %435 = vmatprep.subr.mxu0 0.0
        %436 = vmatpush1.msra.mxu0 0.0
        %437 = vmatprep.subr.mxu0 0.0
        %438 = vmatpush1.msra.mxu0 0.0
        %439 = vmatprep.subr.mxu0 0.0
        %440 = vmatpush1.msra.mxu0 0.0
        %441 = vmatprep.subr.mxu0 0.0
        %442 = vmatpush1.msra.mxu0 0.0
        %443 = vmatprep.subr.mxu0 0.0
        %444 = vmatpush1.msra.mxu0 0.0
        %445 = vmatprep.subr.mxu0 0.0
        %446 = vmatpush1.msra.mxu0 0.0
        %447 = vmatprep.subr.mxu0 0.0
        %448 = vmatpush1.msra.mxu0 0.0
        %449 = vmatprep.subr.mxu0 0.0
        %450 = vmatpush1.msra.mxu0 0.0
        %451 = vmatprep.subr.mxu0 0.0
        %452 = vmatpush1.msra.mxu0 0.0
        %453 = vmatprep.mubr.f32.mxu0 0.0
        %454 = vmatmul.mubr.f32.gmra.mrb[0].mxu0 %v353
        %v455 = vpop.f32.mrb[0].mxu0
        %v456 = vadd.f32 0.0, %v455
        %v457 = vpop.f32.mrb[0].mxu0
        %v458 = vadd.f32 0.0, %v457
        %459 = vmatprep.mubr.f32.mxu0 0.0
        %460 = vmatmul.mubr.f32.gmra.mrb[0].mxu0 %v356
        %v461 = vpop.f32.mrb[0].mxu0
        %v462 = vadd.f32 0.0, %v461
        %v463 = vpop.f32.mrb[0].mxu0
        %v464 = vadd.f32 0.0, %v463
        %465 = vmatprep.mubr.f32.mxu0 0.0
        %466 = vmatmul.mubr.f32.gmra.mrb[0].mxu0 %v359
        %v467 = vpop.f32.mrb[0].mxu0
        %v468 = vadd.f32 0.0, %v467
        %v469 = vpop.f32.mrb[0].mxu0
        %v470 = vadd.f32 0.0, %v469
        %471 = vmatprep.mubr.f32.mxu0 0.0
        %472 = vmatmul.mubr.f32.gmra.mrb[0].mxu0 %v362
        %v473 = vpop.f32.mrb[0].mxu0
        %v474 = vadd.f32 0.0, %v473
        %v475 = vpop.f32.mrb[0].mxu0
        %v476 = vadd.f32 0.0, %v475
        %477 = vmatprep.mubr.f32.mxu0 0.0
        %478 = vmatmul.mubr.f32.gmra.mrb[0].mxu0 %v365
        %v479 = vpop.f32.mrb[0].mxu0
        %v480 = vadd.f32 0.0, %v479
        %v481 = vpop.f32.mrb[0].mxu0
        %v482 = vadd.f32 0.0, %v481
        %483 = vmatprep.mubr.f32.mxu0 0.0
        %484 = vmatmul.mubr.f32.gmra.mrb[0].mxu0 %v368
        %v485 = vpop.f32.mrb[0].mxu0
        %v486 = vadd.f32 0.0, %v485
        %v487 = vpop.f32.mrb[0].mxu0
        %v488 = vadd.f32 0.0, %v487
        %489 = vmatprep.mubr.f32.mxu0 0.0
        %490 = vmatmul.mubr.f32.gmra.mrb[0].mxu0 %v371
        %v491 = vpop.f32.mrb[0].mxu0
        %v492 = vadd.f32 0.0, %v491
        %v493 = vpop.f32.mrb[0].mxu0
        %v494 = vadd.f32 0.0, %v493
        %495 = vmatprep.mubr.f32.mxu0 0.0
        %496 = vmatmul.mubr.f32.gmra.mrb[0].mxu0 %v374
        %v497 = vpop.f32.mrb[0].mxu0
        %v498 = vadd.f32 0.0, %v497
        %v499 = vpop.f32.mrb[0].mxu0
        %v500 = vadd.f32 0.0, %v499
        %501 = vmatprep.mubr.f32.mxu0 0.0
        %502 = vmatmul.mubr.f32.gmra.mrb[0].mxu0 %v377
        %v503 = vpop.f32.mrb[0].mxu0
        %v504 = vadd.f32 0.0, %v503
        %v505 = vpop.f32.mrb[0].mxu0
        %v506 = vadd.f32 0.0, %v505
        %507 = vmatprep.mubr.f32.mxu0 0.0
        %508 = vmatmul.mubr.f32.gmra.mrb[0].mxu0 %v380
        %v509 = vpop.f32.mrb[0].mxu0
        %v510 = vadd.f32 0.0, %v509
        %v511 = vpop.f32.mrb[0].mxu0
        %v512 = vadd.f32 0.0, %v511
        %513 = vdwg.mxu0
        %v514 = vld [vmem:[%s3] sm:$0xff]
        %v515 = vld [vmem:[%s3 + $0x8] sm:$0xff]
        %v516 = vld [vmem:[%s3 + $0x10] sm:$0xff]
        %v517 = vld [vmem:[%s3 + $0x18] sm:$0xff]
        %v518 = vld [vmem:[%s3 + $0x20] sm:$0xff]
        %v519 = vld [vmem:[%s3 + $0x28] sm:$0xff]
        %v520 = vld [vmem:[%s3 + $0x30] sm:$0xff]
        %v521 = vld [vmem:[%s3 + $0x38] sm:$0xff]
        %v522 = vld [vmem:[%s3 + $0x40] sm:$0xff]
        %v523 = vld [vmem:[%s3 + $0x48] sm:$0xff]
        %vm524 = vcmask 302080
        %v526 = vsel %vm524, %v514, 0
        %v529 = vsel %vm524, %v515, 0
        %v532 = vsel %vm524, %v516, 0
        %v535 = vsel %vm524, %v517, 0
        %v538 = vsel %vm524, %v518, 0
        %v541 = vsel %vm524, %v519, 0
        %v544 = vsel %vm524, %v520, 0
        %v547 = vsel %vm524, %v521, 0
        %v550 = vsel %vm524, %v522, 0
        %v553 = vsel %vm524, %v523, 0
        %vm555 = vcmask 1044480
        %v557 = vsel %vm555, %v332, 0
        %v560 = vsel %vm555, %v333, 0
        %562 = vmatprep.subr.mxu0 %v325
        %563 = vmatpush1.msra.mxu0 %v324
        %564 = vmatprep.subr.mxu0 %v327
        %565 = vmatpush1.msra.mxu0 %v326
        %566 = vmatprep.subr.mxu0 %v329
        %567 = vmatpush1.msra.mxu0 %v328
        %568 = vmatprep.subr.mxu0 %v331
        %569 = vmatpush1.msra.mxu0 %v330
        %570 = vmatprep.subr.mxu0 %v560
        %571 = vmatpush1.msra.mxu0 %v557
        %572 = vmatprep.subr.mxu0 0.0
        %573 = vmatpush1.msra.mxu0 0.0
        %574 = vmatprep.subr.mxu0 0.0
        %575 = vmatpush1.msra.mxu0 0.0
        %576 = vmatprep.subr.mxu0 0.0
        %577 = vmatpush1.msra.mxu0 0.0
        %578 = vmatprep.subr.mxu0 0.0
        %579 = vmatpush1.msra.mxu0 0.0
        %580 = vmatprep.subr.mxu0 0.0
        %581 = vmatpush1.msra.mxu0 0.0
        %582 = vmatprep.subr.mxu0 0.0
        %583 = vmatpush1.msra.mxu0 0.0
        %584 = vmatprep.subr.mxu0 0.0
        %585 = vmatpush1.msra.mxu0 0.0
        %586 = vmatprep.subr.mxu0 0.0
        %587 = vmatpush1.msra.mxu0 0.0
        %588 = vmatprep.subr.mxu0 0.0
        %589 = vmatpush1.msra.mxu0 0.0
        %590 = vmatprep.subr.mxu0 0.0
        %591 = vmatpush1.msra.mxu0 0.0
        %592 = vmatprep.subr.mxu0 0.0
        %593 = vmatpush1.msra.mxu0 0.0
        %594 = vmatprep.subr.mxu0 0.0
        %595 = vmatpush1.msra.mxu0 0.0
        %596 = vmatprep.subr.mxu0 0.0
        %597 = vmatpush1.msra.mxu0 0.0
        %598 = vmatprep.subr.mxu0 0.0
        %599 = vmatpush1.msra.mxu0 0.0
        %600 = vmatprep.subr.mxu0 0.0
        %601 = vmatpush1.msra.mxu0 0.0
        %602 = vmatprep.subr.mxu0 0.0
        %603 = vmatpush1.msra.mxu0 0.0
        %604 = vmatprep.subr.mxu0 0.0
        %605 = vmatpush1.msra.mxu0 0.0
        %606 = vmatprep.subr.mxu0 0.0
        %607 = vmatpush1.msra.mxu0 0.0
        %608 = vmatprep.subr.mxu0 0.0
        %609 = vmatpush1.msra.mxu0 0.0
        %610 = vmatprep.subr.mxu0 0.0
        %611 = vmatpush1.msra.mxu0 0.0
        %612 = vmatprep.subr.mxu0 0.0
        %613 = vmatpush1.msra.mxu0 0.0
        %614 = vmatprep.subr.mxu0 0.0
        %615 = vmatpush1.msra.mxu0 0.0
        %616 = vmatprep.subr.mxu0 0.0
        %617 = vmatpush1.msra.mxu0 0.0
        %618 = vmatprep.subr.mxu0 0.0
        %619 = vmatpush1.msra.mxu0 0.0
        %620 = vmatprep.subr.mxu0 0.0
        %621 = vmatpush1.msra.mxu0 0.0
        %622 = vmatprep.subr.mxu0 0.0
        %623 = vmatpush1.msra.mxu0 0.0
        %624 = vmatprep.subr.mxu0 0.0
        %625 = vmatpush1.msra.mxu0 0.0
        %626 = vmatprep.mubr.f32.mxu0 0.0
        %627 = vmatmul.mubr.f32.gmra.mrb[0].mxu0 %v526
        %v628 = vpop.f32.mrb[0].mxu0
        %v629 = vadd.f32 0.0, %v628
        %v630 = vpop.f32.mrb[0].mxu0
        %v631 = vadd.f32 0.0, %v630
        %632 = vmatprep.mubr.f32.mxu0 0.0
        %633 = vmatmul.mubr.f32.gmra.mrb[0].mxu0 %v529
        %v634 = vpop.f32.mrb[0].mxu0
        %v635 = vadd.f32 0.0, %v634
        %v636 = vpop.f32.mrb[0].mxu0
        %v637 = vadd.f32 0.0, %v636
        %638 = vmatprep.mubr.f32.mxu0 0.0
        %639 = vmatmul.mubr.f32.gmra.mrb[0].mxu0 %v532
        %v640 = vpop.f32.mrb[0].mxu0
        %v641 = vadd.f32 0.0, %v640
        %v642 = vpop.f32.mrb[0].mxu0
        %v643 = vadd.f32 0.0, %v642
        %644 = vmatprep.mubr.f32.mxu0 0.0
        %645 = vmatmul.mubr.f32.gmra.mrb[0].mxu0 %v535
        %v646 = vpop.f32.mrb[0].mxu0
        %v647 = vadd.f32 0.0, %v646
        %v648 = vpop.f32.mrb[0].mxu0
        %v649 = vadd.f32 0.0, %v648
        %650 = vmatprep.mubr.f32.mxu0 0.0
        %651 = vmatmul.mubr.f32.gmra.mrb[0].mxu0 %v538
        %v652 = vpop.f32.mrb[0].mxu0
        %v653 = vadd.f32 0.0, %v652
        %v654 = vpop.f32.mrb[0].mxu0
        %v655 = vadd.f32 0.0, %v654
        %656 = vmatprep.mubr.f32.mxu0 0.0
        %657 = vmatmul.mubr.f32.gmra.mrb[0].mxu0 %v541
        %v658 = vpop.f32.mrb[0].mxu0
        %v659 = vadd.f32 0.0, %v658
        %v660 = vpop.f32.mrb[0].mxu0
        %v661 = vadd.f32 0.0, %v660
        %662 = vmatprep.mubr.f32.mxu0 0.0
        %663 = vmatmul.mubr.f32.gmra.mrb[0].mxu0 %v544
        %v664 = vpop.f32.mrb[0].mxu0
        %v665 = vadd.f32 0.0, %v664
        %v666 = vpop.f32.mrb[0].mxu0
        %v667 = vadd.f32 0.0, %v666
        %668 = vmatprep.mubr.f32.mxu0 0.0
        %669 = vmatmul.mubr.f32.gmra.mrb[0].mxu0 %v547
        %v670 = vpop.f32.mrb[0].mxu0
        %v671 = vadd.f32 0.0, %v670
        %v672 = vpop.f32.mrb[0].mxu0
        %v673 = vadd.f32 0.0, %v672
        %674 = vmatprep.mubr.f32.mxu0 0.0
        %675 = vmatmul.mubr.f32.gmra.mrb[0].mxu0 %v550
        %v676 = vpop.f32.mrb[0].mxu0
        %v677 = vadd.f32 0.0, %v676
        %v678 = vpop.f32.mrb[0].mxu0
        %v679 = vadd.f32 0.0, %v678
        %680 = vmatprep.mubr.f32.mxu0 0.0
        %681 = vmatmul.mubr.f32.gmra.mrb[0].mxu0 %v553
        %v682 = vpop.f32.mrb[0].mxu0
        %v683 = vadd.f32 0.0, %v682
        %v684 = vpop.f32.mrb[0].mxu0
        %v685 = vadd.f32 0.0, %v684
        %686 = vdwg.mxu0
        %v687 = vsub.f32 %v456, %v629
        %v688 = vsub.f32 %v458, %v631
        %v689 = vsub.f32 %v462, %v635
        %v690 = vsub.f32 %v464, %v637
        %v691 = vsub.f32 %v468, %v641
        %v692 = vsub.f32 %v470, %v643
        %v693 = vsub.f32 %v474, %v647
        %v694 = vsub.f32 %v476, %v649
        %v695 = vsub.f32 %v480, %v653
        %v696 = vsub.f32 %v482, %v655
        %v697 = vsub.f32 %v486, %v659
        %v698 = vsub.f32 %v488, %v661
        %v699 = vsub.f32 %v492, %v665
        %v700 = vsub.f32 %v494, %v667
        %v701 = vsub.f32 %v498, %v671
        %v702 = vsub.f32 %v500, %v673
        %v703 = vsub.f32 %v504, %v677
        %v704 = vsub.f32 %v506, %v679
        %v705 = vsub.f32 %v510, %v683
        %v706 = vsub.f32 %v512, %v685
        %v707 = vand.u32 2147483647, %v687
        %v708 = vand.u32 2147483647, %v688
        %v709 = vand.u32 2147483647, %v689
        %v710 = vand.u32 2147483647, %v690
        %v711 = vand.u32 2147483647, %v691
        %v712 = vand.u32 2147483647, %v692
        %v713 = vand.u32 2147483647, %v693
        %v714 = vand.u32 2147483647, %v694
        %v715 = vand.u32 2147483647, %v695
        %v716 = vand.u32 2147483647, %v696
        %v717 = vand.u32 2147483647, %v697
        %v718 = vand.u32 2147483647, %v698
        %v719 = vand.u32 2147483647, %v699
        %v720 = vand.u32 2147483647, %v700
        %v721 = vand.u32 2147483647, %v701
        %v722 = vand.u32 2147483647, %v702
        %v723 = vand.u32 2147483647, %v703
        %v724 = vand.u32 2147483647, %v704
        %v725 = vand.u32 2147483647, %v705
        %v726 = vand.u32 2147483647, %v706
        %vm727 = vcmp.lt.f32.partialorder %v707, 1.0
        %vm728 = vcmp.lt.f32.partialorder %v708, 1.0
        %vm729 = vcmp.lt.f32.partialorder %v709, 1.0
        %vm730 = vcmp.lt.f32.partialorder %v710, 1.0
        %vm731 = vcmp.lt.f32.partialorder %v711, 1.0
        %vm732 = vcmp.lt.f32.partialorder %v712, 1.0
        %vm733 = vcmp.lt.f32.partialorder %v713, 1.0
        %vm734 = vcmp.lt.f32.partialorder %v714, 1.0
        %vm735 = vcmp.lt.f32.partialorder %v715, 1.0
        %vm736 = vcmp.lt.f32.partialorder %v716, 1.0
        %vm737 = vcmp.lt.f32.partialorder %v717, 1.0
        %vm738 = vcmp.lt.f32.partialorder %v718, 1.0
        %vm739 = vcmp.lt.f32.partialorder %v719, 1.0
        %vm740 = vcmp.lt.f32.partialorder %v720, 1.0
        %vm741 = vcmp.lt.f32.partialorder %v721, 1.0
        %vm742 = vcmp.lt.f32.partialorder %v722, 1.0
        %vm743 = vcmp.lt.f32.partialorder %v723, 1.0
        %vm744 = vcmp.lt.f32.partialorder %v724, 1.0
        %vm745 = vcmp.lt.f32.partialorder %v725, 1.0
        %vm746 = vcmp.lt.f32.partialorder %v726, 1.0
        %v747 = vmul.f32 %v687, 0.5
        %v748 = vmul.f32 %v688, 0.5
        %v749 = vmul.f32 %v689, 0.5
        %v750 = vmul.f32 %v690, 0.5
        %v751 = vmul.f32 %v691, 0.5
        %v752 = vmul.f32 %v692, 0.5
        %v753 = vmul.f32 %v693, 0.5
        %v754 = vmul.f32 %v694, 0.5
        %v755 = vmul.f32 %v695, 0.5
        %v756 = vmul.f32 %v696, 0.5
        %v757 = vmul.f32 %v697, 0.5
        %v758 = vmul.f32 %v698, 0.5
        %v759 = vmul.f32 %v699, 0.5
        %v760 = vmul.f32 %v700, 0.5
        %v761 = vmul.f32 %v701, 0.5
        %v762 = vmul.f32 %v702, 0.5
        %v763 = vmul.f32 %v703, 0.5
        %v764 = vmul.f32 %v704, 0.5
        %v765 = vmul.f32 %v705, 0.5
        %v766 = vmul.f32 %v706, 0.5
        %v767 = vmul.f32 %v747, %v687
        %v768 = vmul.f32 %v748, %v688
        %v769 = vmul.f32 %v749, %v689
        %v770 = vmul.f32 %v750, %v690
        %v771 = vmul.f32 %v751, %v691
        %v772 = vmul.f32 %v752, %v692
        %v773 = vmul.f32 %v753, %v693
        %v774 = vmul.f32 %v754, %v694
        %v775 = vmul.f32 %v755, %v695
        %v776 = vmul.f32 %v756, %v696
        %v777 = vmul.f32 %v757, %v697
        %v778 = vmul.f32 %v758, %v698
        %v779 = vmul.f32 %v759, %v699
        %v780 = vmul.f32 %v760, %v700
        %v781 = vmul.f32 %v761, %v701
        %v782 = vmul.f32 %v762, %v702
        %v783 = vmul.f32 %v763, %v703
        %v784 = vmul.f32 %v764, %v704
        %v785 = vmul.f32 %v765, %v705
        %v786 = vmul.f32 %v766, %v706
        %v787 = vsub.f32 %v707, 0.5
        %v788 = vsub.f32 %v708, 0.5
        %v789 = vsub.f32 %v709, 0.5
        %v790 = vsub.f32 %v710, 0.5
        %v791 = vsub.f32 %v711, 0.5
        %v792 = vsub.f32 %v712, 0.5
        %v793 = vsub.f32 %v713, 0.5
        %v794 = vsub.f32 %v714, 0.5
        %v795 = vsub.f32 %v715, 0.5
        %v796 = vsub.f32 %v716, 0.5
        %v797 = vsub.f32 %v717, 0.5
        %v798 = vsub.f32 %v718, 0.5
        %v799 = vsub.f32 %v719, 0.5
        %v800 = vsub.f32 %v720, 0.5
        %v801 = vsub.f32 %v721, 0.5
        %v802 = vsub.f32 %v722, 0.5
        %v803 = vsub.f32 %v723, 0.5
        %v804 = vsub.f32 %v724, 0.5
        %v805 = vsub.f32 %v725, 0.5
        %v806 = vsub.f32 %v726, 0.5
        %v807 = vsel %vm727, %v767, %v787
        %v808 = vsel %vm728, %v768, %v788
        %v809 = vsel %vm729, %v769, %v789
        %v810 = vsel %vm730, %v770, %v790
        %v811 = vsel %vm731, %v771, %v791
        %v812 = vsel %vm732, %v772, %v792
        %v813 = vsel %vm733, %v773, %v793
        %v814 = vsel %vm734, %v774, %v794
        %v815 = vsel %vm735, %v775, %v795
        %v816 = vsel %vm736, %v776, %v796
        %v817 = vsel %vm737, %v777, %v797
        %v818 = vsel %vm738, %v778, %v798
        %v819 = vsel %vm739, %v779, %v799
        %v820 = vsel %vm740, %v780, %v800
        %v821 = vsel %vm741, %v781, %v801
        %v822 = vsel %vm742, %v782, %v802
        %v823 = vsel %vm743, %v783, %v803
        %v824 = vsel %vm744, %v784, %v804
        %v825 = vsel %vm745, %v785, %v805
        %v826 = vsel %vm746, %v786, %v806
        %v827 = vadd.f32 %v807, %v809
        %v828 = vadd.f32 %v827, %v811
        %v829 = vadd.f32 %v828, %v813
        %v830 = vadd.f32 %v829, %v815
        %v831 = vadd.f32 %v830, %v817
        %v832 = vadd.f32 %v831, %v819
        %v833 = vadd.f32 %v832, %v821
        %v834 = vadd.f32 %v833, %v823
        %v835 = vadd.f32 %v834, %v825
        %v836 = vrot.slane %v835, 4
        %v837 = vadd.f32 %v835, %v836
        %v838 = vrot.slane %v837, 2
        %v839 = vadd.f32 %v837, %v838
        %v840 = vrot.slane %v839, 1
        %v841 = vadd.f32 %v839, %v840
        %v842 = vadd.f32 %v808, %v810
        %v843 = vadd.f32 %v842, %v812
        %v844 = vadd.f32 %v843, %v814
        %v845 = vadd.f32 %v844, %v816
        %v846 = vadd.f32 %v845, %v818
        %v847 = vadd.f32 %v846, %v820
        %v848 = vadd.f32 %v847, %v822
        %v849 = vadd.f32 %v848, %v824
        %v850 = vadd.f32 %v849, %v826
        %v851 = vrot.slane %v850, 4
        %v852 = vadd.f32 %v850, %v851
        %v853 = vrot.slane %v852, 2
        %v854 = vadd.f32 %v852, %v853
        %v855 = vrot.slane %v854, 1
        %v856 = vadd.f32 %v854, %v855
        %v857 = vmul.f32 %v841, 0.025
        %v858 = vmul.f32 %v856, 0.025
        %vm859 = vcmp.gt.f32.partialorder %v340, 0.0
        %v861 = vlaneseq
        %v862 = vshrl.u32 %v861, 7
        %v863 = vsub.s32 0, %v862
        %v864 = vrot.slane %v340, %v863
        %v865 = vlaneseq
        %v866 = vshrl.u32 %v865, 7
        %v867 = vsub.s32 1, %v866
        %v868 = vrot.slane %v340, %v867
        %v871 = vmul.f32 %v857, %v864
        %v872 = vmul.f32 %v858, %v868
        %v875 = vcombine.low %v871, %v872
        %v877 = vunpack.c.l.s4 1966171168
        %v878 = vunpack.c.0.s8 %v877
        %v879 = vlaneseq
        %v880 = vshrl.u32 %v879, 7
        %v881 = vsub.s32 %v878, %v880
        %v882 = vrot.slane %v875, %v881
        %v884 = vunpack.c.l.s4 1966171168
        %v885 = vunpack.c.0.s8 %v884
        %v886 = vlaneseq
        %v887 = vshrl.u32 %v886, 7
        %v888 = vsub.s32 %v885, %v887
        %v889 = vrot.slane %v882, %v888
        %v891 = vsel %vm859, %v889, 0.0
        %v892 = vadd.f32 %v891, 0.0
        %v894 = vrot.slane %v892, 1
        %v896 = vadd.f32 %v892, %v894
        %v897 = vld [vmem:[%s289] sm:$0x1]
        %v898 = vadd.f32 %v897, %v896
        %899 = vst [vmem:[%s289] sm:$0x1] %v898
        %s900 = sand.u32 %s165, 1
        %s901 = scalar_lea.sflag [#allocation3], %s900
        %s902 = sand.u32 %s165, 1
        %s903 = scalar_lea.vmem [#allocation2], %s902
        // Predicated region
        $region45: #{tpu_custom_call.1} parent=39 // pred_check
          %p904 = pneg %p175
        $region46: #{tpu_custom_call.1} parent=39 // pred_check_branch
          %906 = sbr.rel (%p904) target = $region48
        $region47: #{tpu_custom_call.1} parent=39 // pred_region
          %s908 = ssub.s32 16, 16
          %909 = vsyncadd %s901, %s908
          %s910 = smul.addr %s23, 16
          %s911 = scalar_lea.hbm %s5, %s910
          %s913 = sshll.u32 %s903, 4
          %s914 = int_to_ptr.vmem [resolvable:$true] %s913
          %916 = dma.vmem_to_hbm [thread:$0]  %s914, 16, %s911, %s901
        $region48: #{tpu_custom_call.1} parent=39 // pred_fallthru
          _
      $region40: #{tpu_custom_call.1} parent=5 // pred_fallthru
        _
      %p917 = scmp.le.s32.totalorder 2, %s14
      // Predicated region
      $region49: #{tpu_custom_call.1} parent=5 // pred_check
        %p918 = pneg %p917
      $region50: #{tpu_custom_call.1} parent=5 // pred_check_branch
        %920 = sbr.rel (%p918) target = $region52
      $region51: #{tpu_custom_call.1} parent=5 // pred_region
        %s921 = ssub.s32 %s14, 2
        // Predicated region
        $region53: #{tpu_custom_call.1} parent=51 // pred_check
          %p922 = pneg %p181
        $region54: #{tpu_custom_call.1} parent=51 // pred_check_branch
          %924 = sbr.rel (%p922) target = $region56
        $region55: #{tpu_custom_call.1} parent=51 // pred_region
          %s925 = sand.u32 %s166, 1
          %s926 = scalar_lea.sflag [#allocation3], %s925
          %s927 = sand.u32 %s166, 1
          %s928 = scalar_lea.vmem [#allocation2], %s927
          %929 = dma.done %s926, 16
        $region56: #{tpu_custom_call.1} parent=51 // pred_fallthru
          _
      $region52: #{tpu_custom_call.1} parent=5 // pred_fallthru
        _
    $region6: #{tpu_custom_call.1} parent=1 // loop_footer
      %s18 = sadd.s32 1, %s14
    $region7: #{tpu_custom_call.1} parent=1 // loop_footer_branch
      %13 = sbr.rel target = $region3
    $region8: #{tpu_custom_call.1} parent=1 // loop_exit
      _
    %930 = vsyncpa [#allocation3], 1
    %s931 = scalar_lea.sflag [#allocation3], 1
    %932 = vsyncpa %s931, 1

</llo_original>
